<compile_context>
chip_gen: v7x
topology: tpu7x:2x2x1
jax: 0.10.0
libtpu: 0.0.40
codegen_flags: <defaults>
</compile_context>

<pallas_src>
import functools
import math

import jax
import jax.numpy as jnp
from jax import lax
from jax.experimental import pallas as pl
from jax.experimental.pallas import tpu as pltpu


# ---------------------------------------------------------------------------
# Kernel
# ---------------------------------------------------------------------------
def _arc_margin_kernel(cos_ref, label_ref, out_ref, *, n_sub, tile_c, cos_m,
                       sin_m, th, mm, scale, easy_margin):
    """ArcFace margin transform for one (tile_n, tile_c) output block.

    cos_ref  : (tile_n, tile_c)        pre-maxed cosine   (n_sub == 1), or
               (tile_n, n_sub, tile_c) sub-center-blocked raw cosine.
    label_ref: (tile_n, 1) int32 target class per row.
    out_ref  : (tile_n, tile_c) scaled margin logits.
    """
    if n_sub == 1:
        cosine = cos_ref[...].astype(jnp.float32)
    else:
        # Fused sub-center max: reduction over the small sublane axis.  The
        # extra work lands on VPU/XLU slots that are idle in this mem-bound
        # kernel and removes the separate XLA max pass over HBM.
        cosine = jnp.max(cos_ref[...].astype(jnp.float32), axis=1)

    sine = jnp.sqrt(jnp.clip(1.0 - cosine * cosine, 0.0, 1.0))
    phi = cosine * cos_m - sine * sin_m
    if easy_margin:
        phi = jnp.where(cosine > 0.0, phi, cosine)
    else:
        phi = jnp.where(cosine > th, phi, cosine - mm)

    # one_hot*phi + (1-one_hot)*cosine  ==  select phi on the label column.
    col = lax.broadcasted_iota(jnp.int32, cosine.shape, 1)
    col = col + pl.program_id(1) * tile_c            # class-tile offset
    out = jnp.where(col == label_ref[...], phi, cosine)

    out_ref[...] = (out * scale).astype(out_ref.dtype)


# ---------------------------------------------------------------------------
# Tiling / VMEM sizing
# ---------------------------------------------------------------------------
def _round_up(x, m):
    return (x + m - 1) // m * m


def _vmem_capacity_bytes():
    try:
        info = pltpu.get_tpu_info()
        cap = getattr(info, "vmem_capacity_bytes", None)
        if cap:
            return int(cap)
    except Exception:
        pass
    return 64 * 1024 * 1024          # v7x per-TensorCore size: safe everywhere


def _choose_tiles(n, c_pad, n_sub, itemsize):
    cap = _vmem_capacity_bytes()
    # Double-buffered working-set budget, generation aware:
    #   <=64 MiB/TC (v7x)  -> ~48 MiB;  128 MiB (v5e/v6e) -> ~80 MiB.
    budget = (48 << 20) if cap <= (64 << 20) else (80 << 20)
    vmem_limit = min(budget + (16 << 20), cap * 7 // 8)

    # VMEM bytes per (row, class) element: 2x double-buffered input (the K
    # sub-center axis pads to 8 sublanes when blocked) + 2x output buffers.
    in_rows = 1 if n_sub == 1 else _round_up(n_sub, 8)
    bytes_per_elem = 2 * (in_rows + 1) * itemsize

    tile_c = min(c_pad, 4096)                        # large, 128-aligned lanes
    tile_n = budget // (bytes_per_elem * tile_c)
    while tile_n < 64 and tile_c > 128:
        tile_c = max(128, (tile_c // 2) // 128 * 128)
        tile_n = budget // (bytes_per_elem * tile_c)

    if tile_n >= n:
        tile_n = n                                   # full dim is always legal
    else:
        tile_n = max(16, min(1024, (tile_n // 16) * 16))

    # v7x has two TensorCores sharing the 'parallel' axes: keep >=2 grid steps
    # when there is enough work to split.
    if n >= 32 and pl.cdiv(n, tile_n) * pl.cdiv(c_pad, tile_c) == 1:
        tile_n = _round_up(pl.cdiv(n, 2), 16)

    return tile_n, tile_c, vmem_limit


# ---------------------------------------------------------------------------
# Wrapper
# ---------------------------------------------------------------------------
def subcenter_arc_margin(cosine, label, *, K=3, s=30.0, m=0.5,
                         easy_margin=False, subcenters_blocked=False):
    """Pallas-backed SubcenterArcMarginProduct.forward.

    cosine: (N, n_classes*K) cosine similarities.  Default layout matches the
        PyTorch module (sub-centers interleaved: column = class*K + k).  If
        the upstream weights are stored with sub-centers blocked
        (column = k*n_classes + class), pass subcenters_blocked=True and the
        K-way max is fused into the kernel (one less HBM pass).
    label : (N,) integer class labels.
    returns: (N, n_classes) scaled margin logits (same dtype as `cosine`).
    """
    n, ck = cosine.shape
    assert ck % K == 0, "class axis must be a multiple of K"
    c = ck // K

    scale = math.sqrt(2.0) * math.log(c - 1) if s == 'auto' else float(s)
    c_pad = max(128, _round_up(c, 128))              # unmasked lane-dense vst

    if subcenters_blocked and K > 1:
        cos_in = cosine.reshape(n, K, c)             # free re-grouping
        if c_pad != c:
            cos_in = jnp.pad(cos_in, ((0, 0), (0, 0), (0, c_pad - c)))
        n_sub = K
        read_cols = K * c_pad
    else:
        # Interleaved layout: the per-class max over K sub-centers is a
        # stride-K lane gather with no layout-preserving Mosaic tiling, so it
        # stays in XLA; allow_input_fusion lets XLA fold it into this call's
        # input pipeline when possible.
        # TODO(synk): store the sub-center weights blocked ([k][class]) at
        # init (or fold the normalized matmul into this kernel as an MXU
        # epilogue) to remove this extra HBM pass entirely.
        cos_in = cosine if K == 1 else jnp.max(cosine.reshape(n, c, K), axis=2)
        if c_pad != c:
            cos_in = jnp.pad(cos_in, ((0, 0), (0, c_pad - c)))
        n_sub = 1
        read_cols = c_pad

    label2d = jnp.asarray(label, dtype=jnp.int32).reshape(n, 1)

    itemsize = jnp.dtype(cos_in.dtype).itemsize
    tile_n, tile_c, vmem_limit = _choose_tiles(n, c_pad, n_sub, itemsize)
    grid = (pl.cdiv(n, tile_n), pl.cdiv(c_pad, tile_c))

    if n_sub == 1:
        cos_spec = pl.BlockSpec((tile_n, tile_c), lambda i, j: (i, j))
    else:
        cos_spec = pl.BlockSpec((tile_n, n_sub, tile_c), lambda i, j: (i, 0, j))
    # Label block index only depends on the row axis; with the class axis
    # innermost it is fetched once per row tile and stays resident across j.
    label_spec = pl.BlockSpec((tile_n, 1), lambda i, j: (i, 0))

    kernel = functools.partial(
        _arc_margin_kernel, n_sub=n_sub, tile_c=tile_c,
        cos_m=math.cos(m), sin_m=math.sin(m),
        th=math.cos(math.pi - m), mm=math.sin(math.pi - m) * m,
        scale=scale, easy_margin=bool(easy_margin))

    cost = pl.CostEstimate(
        flops=(6 + (n_sub - 1)) * n * c_pad,
        transcendentals=n * c_pad,
        bytes_accessed=(read_cols + c_pad) * n * itemsize + n * 4)

    out = pl.pallas_call(
        kernel,
        out_shape=jax.ShapeDtypeStruct((n, c_pad), cosine.dtype),
        grid_spec=pltpu.PrefetchScalarGridSpec(
            num_scalar_prefetch=0,
            grid=grid,
            in_specs=[cos_spec, label_spec],
            out_specs=pl.BlockSpec((tile_n, tile_c), lambda i, j: (i, j)),
        ),
        compiler_params=pltpu.CompilerParams(
            dimension_semantics=("parallel", "parallel"),
            vmem_limit_bytes=int(vmem_limit),
            allow_input_fusion=[True, False]),
        cost_estimate=cost,
    )(cos_in, label2d)

    return out[:, :c] if c_pad != c else out


# ---------------------------------------------------------------------------
# Plain-JAX reference (mirrors the PyTorch module)
# ---------------------------------------------------------------------------
def _subcenter_arc_margin_ref(cosine, label, *, K=3, s=30.0, m=0.5,
                              easy_margin=False):
    n, ck = cosine.shape
    c = ck // K
    x = cosine.astype(jnp.float32)
    if K > 1:
        x = jnp.max(x.reshape(n, c, K), axis=2)
    sine = jnp.sqrt(jnp.clip(1.0 - x * x, 0.0, 1.0))
    phi = x * math.cos(m) - sine * math.sin(m)
    if easy_margin:
        phi = jnp.where(x > 0.0, phi, x)
    else:
        phi = jnp.where(x > math.cos(math.pi - m), phi,
                        x - math.sin(math.pi - m) * m)
    one_hot = jax.nn.one_hot(jnp.asarray(label), c, dtype=x.dtype)
    out = one_hot * phi + (1.0 - one_hot) * x
    scale = math.sqrt(2.0) * math.log(c - 1) if s == 'auto' else float(s)
    return (out * scale).astype(cosine.dtype)


if __name__ == "__main__":
    key = jax.random.PRNGKey(0)
    k_cos, k_lbl = jax.random.split(key)

    N, C, K = 8, 16, 3                       # batch=8, 16 classes, 3 sub-centers
    cosine = jax.random.uniform(k_cos, (N, C * K), dtype=jnp.float32,
                                minval=-1.0, maxval=1.0)
    label = jax.random.randint(k_lbl, (N,), 0, C, dtype=jnp.int32)

    ref = _subcenter_arc_margin_ref(cosine, label, K=K, s=30.0, m=0.5,
                                    easy_margin=False)

    # 1) Default (PyTorch interleaved sub-center layout) path.
    out = jax.block_until_ready(
        subcenter_arc_margin(cosine, label, K=K, s=30.0, m=0.5,
                             easy_margin=False))
    assert out.shape == (N, C)
    assert jnp.allclose(out, ref, rtol=1e-5, atol=1e-4), (out, ref)

    # 2) Sub-center-blocked layout: same data, columns re-ordered so the K-way
    #    max is fused inside the kernel (one fewer HBM pass).
    cosine_blocked = cosine.reshape(N, C, K).transpose(0, 2, 1).reshape(N, K * C)
    out_b = jax.block_until_ready(
        subcenter_arc_margin(cosine_blocked, label, K=K, s=30.0, m=0.5,
                             easy_margin=False, subcenters_blocked=True))
    assert jnp.allclose(out_b, ref, rtol=1e-5, atol=1e-4), (out_b, ref)

    # 3) easy_margin branch and s='auto' scaling path.
    out2 = jax.block_until_ready(
        subcenter_arc_margin(cosine, label, K=K, s='auto', m=0.5,
                             easy_margin=True))
    ref2 = _subcenter_arc_margin_ref(cosine, label, K=K, s='auto', m=0.5,
                                     easy_margin=True)
    assert jnp.allclose(out2, ref2, rtol=1e-5, atol=1e-4), (out2, ref2)

    print("KERNEL_OK")
</pallas_src>

<mosaic_0001>
module attributes {stable_mosaic.version = 11 : i64} {
  func.func @_arc_margin_kernel(%arg0: i32, %arg1: i32, %arg2: memref<8x128xf32, #tpu.memory_space<vmem>>, %arg3: memref<8x1xi32, #tpu.memory_space<vmem>>, %arg4: memref<8x128xf32, #tpu.memory_space<vmem>>) attributes {dimension_semantics = [#tpu.dimension_semantics<parallel>, #tpu.dimension_semantics<parallel>], iteration_bounds = array<i64: 1, 1>, scalar_prefetch = 0 : i64, scratch_operands = 0 : i64, tpu.core_type = #tpu.core_type<tc>, window_params = [{transform_indices = @transform_0, window_bounds = array<i64: 8, 128>}, {transform_indices = @transform_1, window_bounds = array<i64: 8, 1>}, {transform_indices = @transform_2, window_bounds = array<i64: 8, 128>}]} {
    %c0 = arith.constant 0 : index
    %c0_0 = arith.constant 0 : index
    %0 = vector.load %arg2[%c0, %c0_0] : memref<8x128xf32, #tpu.memory_space<vmem>>, vector<8x128xf32>
    %1 = arith.mulf %0, %0 : vector<8x128xf32>
    %cst = arith.constant 1.000000e+00 : f32
    %2 = vector.broadcast %cst : f32 to vector<8x128xf32>
    %3 = arith.subf %2, %1 : vector<8x128xf32>
    %cst_1 = arith.constant 0.000000e+00 : f32
    %cst_2 = arith.constant 1.000000e+00 : f32
    %4 = vector.broadcast %cst_1 : f32 to vector<8x128xf32>
    %5 = arith.maximumf %4, %3 : vector<8x128xf32>
    %6 = vector.broadcast %cst_2 : f32 to vector<8x128xf32>
    %7 = arith.minimumf %6, %5 : vector<8x128xf32>
    %8 = math.sqrt %7 : vector<8x128xf32>
    %cst_3 = arith.constant 0.87758255 : f32
    %9 = vector.broadcast %cst_3 : f32 to vector<8x128xf32>
    %10 = arith.mulf %0, %9 : vector<8x128xf32>
    %cst_4 = arith.constant 0.47942555 : f32
    %11 = vector.broadcast %cst_4 : f32 to vector<8x128xf32>
    %12 = arith.mulf %8, %11 : vector<8x128xf32>
    %13 = arith.subf %10, %12 : vector<8x128xf32>
    %cst_5 = arith.constant -0.87758255 : f32
    %14 = vector.broadcast %cst_5 : f32 to vector<8x128xf32>
    %15 = arith.cmpf ogt, %0, %14 : vector<8x128xf32>
    %cst_6 = arith.constant 0.239712775 : f32
    %16 = vector.broadcast %cst_6 : f32 to vector<8x128xf32>
    %17 = arith.subf %0, %16 : vector<8x128xf32>
    %18 = arith.select %15, %13, %17 : vector<8x128xi1>, vector<8x128xf32>
    %19 = tpu.iota {dimensions = array<i32: 1>} : vector<8x128xi32>
    %c128_i32 = arith.constant 128 : i32
    %20 = arith.muli %arg1, %c128_i32 : i32
    %21 = vector.broadcast %20 : i32 to vector<8x128xi32>
    %22 = arith.addi %19, %21 : vector<8x128xi32>
    %c0_7 = arith.constant 0 : index
    %c0_8 = arith.constant 0 : index
    %23 = vector.load %arg3[%c0_7, %c0_8] : memref<8x1xi32, #tpu.memory_space<vmem>>, vector<8x1xi32>
    %24 = vector.broadcast %23 : vector<8x1xi32> to vector<8x128xi32>
    %25 = arith.cmpi eq, %22, %24 : vector<8x128xi32>
    %26 = arith.select %25, %18, %0 : vector<8x128xi1>, vector<8x128xf32>
    %cst_9 = arith.constant 3.000000e+01 : f32
    %27 = vector.broadcast %cst_9 : f32 to vector<8x128xf32>
    %28 = arith.mulf %26, %27 : vector<8x128xf32>
    %c0_10 = arith.constant 0 : index
    %c0_11 = arith.constant 0 : index
    %29 = vector.load %arg4[%c0_10, %c0_11] : memref<8x128xf32, #tpu.memory_space<vmem>>, vector<8x128xf32>
    tpu.vector_store %arg4[%c0_10, %c0_11], %28 {strides = array<i32>} : memref<8x128xf32, #tpu.memory_space<vmem>>, vector<8x128xf32>,
    return
  }
  func.func @transform_0(%arg0: i32, %arg1: i32) -> (i32, i32) {
    %c0_i32 = arith.constant 0 : i32
    return %arg0, %arg1 : i32, i32
  }
  func.func @transform_1(%arg0: i32, %arg1: i32) -> (i32, i32) {
    %c0_i32 = arith.constant 0 : i32
    %c0_i32_0 = arith.constant 0 : i32
    return %arg0, %c0_i32 : i32, i32
  }
  func.func @transform_2(%arg0: i32, %arg1: i32) -> (i32, i32) {
    %c0_i32 = arith.constant 0 : i32
    return %arg0, %arg1 : i32, i32
  }
}

</mosaic_0001>

<llo_original>
// kernel: tpu_custom_call.1
$region0: #{tpu_custom_call.1}
  #allocation0 [shape = 'u32[]', space=smem, size = 0x4, offset = 0x4, fixed_abs, tag = 'smem constant byte address 0x4 - core index']
  #allocation1 [shape = 'u32[144,128]{1,0:T(1,128)}', space=vmem, size = 0x12000, scoped, tag = 'internal scratch']
  %s0 = inlined_call_operand.vmem [shape: f32[8,128], index: 0, kind: input, shape index: {}]
  %s1 = inlined_call_operand.vmem [shape: s32[8,1], index: 1, kind: input, shape index: {}]
  %s2 = inlined_call_operand.hbm [shape: f32[8,128], index: 2, kind: output, shape index: {}]
  %s3 = sld [smem:[#allocation0]]
  $region18: #{tpu_custom_call.1} parent=0
    _
  %s5 = ssub.s32 1, %s3
  %s6 = scalar_select 0, %s5, %s3
  $region1: #{tpu_custom_call.1} parent=0
    #allocation2 [shape = 'u8[4096]{0}', space=vmem, size = 0x1000, scoped, tag = 'output window, operand 0, single buffered']
    #allocation3 [shape = 's32[1]{0}', space=sflag, size = 0x4, scoped, tag = 'scoped memory for tpu_custom_call.1']
    %7 = vsyncpa [#allocation3], 0
    // Predicated region
    $region2: #{tpu_custom_call.1} parent=1 // pred_check
      _
    $region3: #{tpu_custom_call.1} parent=1 // pred_check_branch
      %9 = sbr.rel (0) target = $region5
    $region4: #{tpu_custom_call.1} parent=1 // pred_region
      _
    $region5: #{tpu_custom_call.1} parent=1 // pred_fallthru
      _
    // Predicated region
    $region6: #{tpu_custom_call.1} parent=1 // pred_check
      _
    $region7: #{tpu_custom_call.1} parent=1 // pred_check_branch
      %11 = sbr.rel (0) target = $region9
    $region8: #{tpu_custom_call.1} parent=1 // pred_region
      _
    $region9: #{tpu_custom_call.1} parent=1 // pred_fallthru
      _
    %v12 = vld [vmem:[%s0] sm:$0xff]
    %v13 = vmul.f32 %v12, %v12
    %v14 = vsub.f32 1.0, %v13
    %v15 = vmax.f32 %v14, 0.0
    %v16 = vmin.f32 %v15, 1.0
    %v17 = vrsqrt.pop %v16
    %v18 = vmul.f32 %v16, %v17
    %vm19 = vcmp.eq.f32.partialorder %v16, inf
    %v20 = vsel %vm19, %v16, %v18
    %vm21 = vcmp.eq.f32.partialorder %v16, 0.0
    %v22 = vand.u32 %v16, 2147483648
    %v23 = vsel %vm21, %v22, %v20
    %v24 = vmul.f32 %v12, 0.87758255
    %v25 = vmul.f32 %v23, 0.47942555
    %v26 = vsub.f32 %v24, %v25
    %vm27 = vcmp.gt.f32.partialorder %v12, -0.87758255
    %v28 = vsub.f32 %v12, 0.23971277
    %v29 = vsel %vm27, %v26, %v28
    %v30 = vlaneseq
    %v31 = vand.u32 %v30, 127
    %s32 = smul.u32 0, 128
    %v33 = vstv %s32
    %v34 = vadd.s32 %v31, %v33
    %v35 = vld [vmem:[%s1] sm:$0xff]
    %36 = vset.pattern.permute.xlu0 0
    %37 = vperm.xlu0 %36, %v35
    %v38 = vpop.permute.xlu0 %37
    %vm39 = vcmp.eq.s32.totalorder %v34, %v38
    %v40 = vsel %vm39, %v29, %v12
    %v41 = vmul.f32 %v40, 30.0
    %42 = vst [vmem:[#allocation2] sm:$0xff] %v41
    // Predicated region
    $region10: #{tpu_custom_call.1} parent=1 // pred_check
      _
    $region11: #{tpu_custom_call.1} parent=1 // pred_check_branch
      %44 = sbr.rel (0) target = $region13
    $region12: #{tpu_custom_call.1} parent=1 // pred_region
      %s46 = ssub.s32 128, 128
      %47 = vsyncadd [#allocation3], %s46
      %s49 = sshll.u32 [#allocation2], 4
      %s50 = int_to_ptr.vmem [resolvable:$true] %s49
      %52 = dma.vmem_to_hbm [thread:$0]  %s50, 128, %s2, [#allocation3]
    $region13: #{tpu_custom_call.1} parent=1 // pred_fallthru
      _
    // Predicated region
    $region14: #{tpu_custom_call.1} parent=1 // pred_check
      _
    $region15: #{tpu_custom_call.1} parent=1 // pred_check_branch
      %54 = sbr.rel (0) target = $region17
    $region16: #{tpu_custom_call.1} parent=1 // pred_region
      %55 = dma.done [#allocation3], 128
    $region17: #{tpu_custom_call.1} parent=1 // pred_fallthru
      _
    %56 = vsyncpa [#allocation3], 1

</llo_original>
